<compile_context>
chip_gen: v7x
topology: tpu7x:2x2x1
jax: 0.10.0
libtpu: 0.0.40
codegen_flags: <defaults>
</compile_context>

<pallas_src>
import numpy as np
import jax
import jax.numpy as jnp
from jax import lax
from jax.experimental import pallas as pl
from jax.experimental.pallas import tpu as pltpu

_VMEM_BUDGET = 24 << 20  # conservative; fits v5e/v6e/v7x scoped limits we request


def _gauss_kernel(x_ref, wsq_ref, wlin_ref, bias_ref, o_ref):
    # x_ref:   (tf, D)   frame tile (streamed from HBM once)
    # wsq_ref: (K, D)    -0.5 * prec2            (VMEM-resident)
    # wlin_ref:(K, D)    mu * prec2              (VMEM-resident)
    # bias_ref:(1, K)    per-component bias row  (VMEM-resident)
    x = x_ref[...]
    nt = (((1,), (1,)), ((), ()))  # contract last dim of both operands (NT form)
    quad = lax.dot_general(x * x, wsq_ref[...], nt,
                           preferred_element_type=jnp.float32)   # (tf, K)
    lin = lax.dot_general(x, wlin_ref[...], nt,
                          preferred_element_type=jnp.float32)    # (tf, K)
    o_ref[...] = (quad + lin + bias_ref[...]).astype(o_ref.dtype)


def _pick_tf(F, D, K, budget=_VMEM_BUDGET):
    """Largest frame tile that fits the VMEM budget and keeps >=2 grid steps."""
    comp_bytes = 2 * (2 * K * D + K) * 4          # resident tensors (double-buffered)
    tf = 8
    for cand in (512, 256, 128, 64, 32, 16, 8):
        step_bytes = 2 * cand * (D + K) * 4       # double-buffered x tile + out tile
        if comp_bytes + step_bytes <= budget and F >= 2 * cand:
            tf = cand
            break
    return tf


def gauss_log_likelihood(x, mu, cov, *, tf=None):
    """x: (B, T, D), mu/cov: (K, D) -> (B, T, K) float32."""
    B, T, D = x.shape
    K, Dm = mu.shape
    assert D == Dm
    F = B * T

    # ---- hoisted per-component precompute (K*D work, done once, plain JAX) ----
    mu = mu.astype(jnp.float32)
    cov = cov.astype(jnp.float32)
    prec = lax.rsqrt(cov)
    prec2 = prec * prec
    wsq = (-0.5) * prec2                                   # (K, D)
    wlin = mu * prec2                                      # (K, D)
    bias = (-0.5 * jnp.sum(mu * mu * prec2, axis=1)
            + jnp.sum(jnp.log(prec), axis=1)
            - 0.5 * D * np.log(2.0 * np.pi))               # (K,)
    bias = bias.reshape(1, K).astype(jnp.float32)

    # Component tensors must fit VMEM for the resident (single-pass) kernel.
    # TODO(synk): add a tiled K/D-reduction fallback for very large K*D.
    assert 2 * (2 * K * D + K) * 4 <= _VMEM_BUDGET, "K*D too large for resident path"

    if tf is None:
        tf = _pick_tf(F, D, K)
    n_steps = pl.cdiv(F, tf)
    Fp = n_steps * tf

    x2d = x.reshape(F, D).astype(jnp.float32)
    if Fp != F:
        x2d = jnp.pad(x2d, ((0, Fp - F), (0, 0)))

    out = pl.pallas_call(
        _gauss_kernel,
        out_shape=jax.ShapeDtypeStruct((Fp, K), jnp.float32),
        grid_spec=pltpu.PrefetchScalarGridSpec(
            num_scalar_prefetch=0,
            grid=(n_steps,),
            in_specs=[
                pl.BlockSpec((tf, D), lambda i: (i, 0)),   # x tile (streamed)
                pl.BlockSpec((K, D), lambda i: (0, 0)),    # wsq  (resident)
                pl.BlockSpec((K, D), lambda i: (0, 0)),    # wlin (resident)
                pl.BlockSpec((1, K), lambda i: (0, 0)),    # bias (resident)
            ],
            out_specs=pl.BlockSpec((tf, K), lambda i: (i, 0)),
        ),
        compiler_params=pltpu.CompilerParams(
            dimension_semantics=("parallel",),
            vmem_limit_bytes=32 << 20,
        ),
    )(x2d, wsq, wlin, bias)

    return out[:F].reshape(B, T, K)


def gauss_reference(x, mu, cov):
    """Pure-JAX reference mirroring the PyTorch code."""
    B, T, D = x.shape
    K = mu.shape[0]
    xf = x.reshape(B * T, 1, D)
    mu_ = mu[None, :, :]
    cov_ = cov[None, :, :]
    prec = lax.rsqrt(cov_)
    prec2 = prec ** 2
    log_p = jnp.sum((mu_ * mu_ + xf * xf - 2.0 * xf * mu_) * prec2, axis=2, keepdims=True)
    log_det = jnp.sum(jnp.log(prec), axis=2, keepdims=True)
    ll = -0.5 * (D * np.log(2.0 * np.pi) + log_p) + log_det
    return ll.reshape(B, T, K)


if __name__ == "__main__":
    # Module hyperparameters (synthetic, deterministic init).
    num_bpe = 128
    fea_dim = 256
    init_mean = 0.5
    init_std = 1.0

    batch, num_frames = 2, 8

    key = jax.random.PRNGKey(0)
    k_mu, k_x = jax.random.split(key)

    # Parameters: mu ~ U[0,1)*init_std + init_mean, cov = ones (as in __init__).
    mu = jax.random.uniform(k_mu, (num_bpe, fea_dim), dtype=jnp.float32) * init_std + init_mean
    cov = jnp.ones((num_bpe, fea_dim), dtype=jnp.float32)

    x = jax.random.normal(k_x, (batch, num_frames, fea_dim), dtype=jnp.float32)

    out = gauss_log_likelihood(x, mu, cov)
    out = jax.block_until_ready(out)

    ref = gauss_reference(x, mu, cov)
    np.testing.assert_allclose(np.asarray(out), np.asarray(ref), rtol=1e-4, atol=1e-3)

    print("KERNEL_OK")
</pallas_src>

<mosaic_0001>
module attributes {stable_mosaic.version = 11 : i64} {
  func.func @_gauss_kernel(%arg0: i32, %arg1: memref<8x256xf32, #tpu.memory_space<vmem>>, %arg2: memref<128x256xf32, #tpu.memory_space<vmem>>, %arg3: memref<128x256xf32, #tpu.memory_space<vmem>>, %arg4: memref<1x128xf32, #tpu.memory_space<vmem>>, %arg5: memref<8x128xf32, #tpu.memory_space<vmem>>) attributes {dimension_semantics = [#tpu.dimension_semantics<parallel>], iteration_bounds = array<i64: 2>, scalar_prefetch = 0 : i64, scratch_operands = 0 : i64, tpu.core_type = #tpu.core_type<tc>, window_params = [{transform_indices = @transform_0, window_bounds = array<i64: 8, 256>}, {pipeline_mode = #tpu.pipeline_mode<synchronous>, transform_indices = @transform_1, window_bounds = array<i64: 128, 256>}, {pipeline_mode = #tpu.pipeline_mode<synchronous>, transform_indices = @transform_2, window_bounds = array<i64: 128, 256>}, {pipeline_mode = #tpu.pipeline_mode<synchronous>, transform_indices = @transform_3, window_bounds = array<i64: 1, 128>}, {transform_indices = @transform_4, window_bounds = array<i64: 8, 128>}]} {
    %c0 = arith.constant 0 : index
    %c0_0 = arith.constant 0 : index
    %0 = vector.load %arg1[%c0, %c0_0] : memref<8x256xf32, #tpu.memory_space<vmem>>, vector<8x256xf32>
    %1 = arith.mulf %0, %0 : vector<8x256xf32>
    %c0_1 = arith.constant 0 : index
    %c0_2 = arith.constant 0 : index
    %2 = vector.load %arg2[%c0_1, %c0_2] : memref<128x256xf32, #tpu.memory_space<vmem>>, vector<128x256xf32>
    %cst = arith.constant dense<0.000000e+00> : vector<8x128xf32>
    %3 = tpu.matmul %1, %2, %cst {dimension_numbers = #tpu.dot_dimension_numbers<[1], [1], [0], [0], [0, 0, 1, 0], [], []>} : vector<8x256xf32>, vector<128x256xf32>, vector<8x128xf32> -> vector<8x128xf32>
    %c0_3 = arith.constant 0 : index
    %c0_4 = arith.constant 0 : index
    %4 = vector.load %arg3[%c0_3, %c0_4] : memref<128x256xf32, #tpu.memory_space<vmem>>, vector<128x256xf32>
    %cst_5 = arith.constant dense<0.000000e+00> : vector<8x128xf32>
    %5 = tpu.matmul %0, %4, %cst_5 {dimension_numbers = #tpu.dot_dimension_numbers<[1], [1], [0], [0], [0, 0, 1, 0], [], []>} : vector<8x256xf32>, vector<128x256xf32>, vector<8x128xf32> -> vector<8x128xf32>
    %6 = arith.addf %3, %5 : vector<8x128xf32>
    %c0_6 = arith.constant 0 : index
    %c0_7 = arith.constant 0 : index
    %7 = vector.load %arg4[%c0_6, %c0_7] : memref<1x128xf32, #tpu.memory_space<vmem>>, vector<1x128xf32>
    %8 = vector.broadcast %7 : vector<1x128xf32> to vector<8x128xf32>
    %9 = arith.addf %6, %8 : vector<8x128xf32>
    %c0_8 = arith.constant 0 : index
    %c0_9 = arith.constant 0 : index
    %10 = vector.load %arg5[%c0_8, %c0_9] : memref<8x128xf32, #tpu.memory_space<vmem>>, vector<8x128xf32>
    tpu.vector_store %arg5[%c0_8, %c0_9], %9 {strides = array<i32>} : memref<8x128xf32, #tpu.memory_space<vmem>>, vector<8x128xf32>,
    return
  }
  func.func @transform_0(%arg0: i32) -> (i32, i32) {
    %c0_i32 = arith.constant 0 : i32
    %c0_i32_0 = arith.constant 0 : i32
    return %arg0, %c0_i32 : i32, i32
  }
  func.func @transform_1(%arg0: i32) -> (i32, i32) {
    %c0_i32 = arith.constant 0 : i32
    %c0_i32_0 = arith.constant 0 : i32
    %c0_i32_1 = arith.constant 0 : i32
    return %c0_i32, %c0_i32_0 : i32, i32
  }
  func.func @transform_2(%arg0: i32) -> (i32, i32) {
    %c0_i32 = arith.constant 0 : i32
    %c0_i32_0 = arith.constant 0 : i32
    %c0_i32_1 = arith.constant 0 : i32
    return %c0_i32, %c0_i32_0 : i32, i32
  }
  func.func @transform_3(%arg0: i32) -> (i32, i32) {
    %c0_i32 = arith.constant 0 : i32
    %c0_i32_0 = arith.constant 0 : i32
    %c0_i32_1 = arith.constant 0 : i32
    return %c0_i32, %c0_i32_0 : i32, i32
  }
  func.func @transform_4(%arg0: i32) -> (i32, i32) {
    %c0_i32 = arith.constant 0 : i32
    %c0_i32_0 = arith.constant 0 : i32
    return %arg0, %c0_i32 : i32, i32
  }
}

</mosaic_0001>

<llo_original>
// kernel: tpu_custom_call.1
$region0: #{tpu_custom_call.1}
  #allocation0 [shape = 'u32[]', space=smem, size = 0x4, offset = 0x4, fixed_abs, tag = 'smem constant byte address 0x4 - core index']
  #allocation1 [shape = 'u32[144,128]{1,0:T(1,128)}', space=vmem, size = 0x12000, scoped, tag = 'internal scratch']
  %s0 = inlined_call_operand.hbm [shape: f32[16,256], index: 0, kind: input, shape index: {}]
  %s1 = inlined_call_operand.hbm [shape: f32[128,256], index: 1, kind: input, shape index: {}]
  %s2 = inlined_call_operand.hbm [shape: f32[128,256], index: 2, kind: input, shape index: {}]
  %s3 = inlined_call_operand.vmem [shape: f32[1,128], index: 3, kind: input, shape index: {}]
  %s4 = inlined_call_operand.hbm [shape: f32[16,128], index: 4, kind: output, shape index: {}]
  %s5 = sld [smem:[#allocation0]]
  $region61: #{tpu_custom_call.1} parent=0
    _
  %s7 = ssub.s32 1, %s5
  %s8 = scalar_select 0, %s7, %s5
  $region1: #{tpu_custom_call.1} parent=0
    #allocation2 [shape = 'u8[16384]{0}', space=vmem, size = 0x4000, scoped, tag = 'input window, operand 0']
    #allocation3 [shape = 's32[2]{0}', space=sflag, size = 0x8, scoped, tag = 'scoped memory for tpu_custom_call.1']
    #allocation4 [shape = 's32[2]{0}', space=sflag, size = 0x8, scoped, tag = 'scoped memory for tpu_custom_call.1']
    #allocation5 [shape = 'u8[131072]{0}', space=vmem, size = 0x20000, scoped, tag = 'input window, operand 1, single buffered']
    #allocation6 [shape = 's32[1]{0}', space=sflag, size = 0x4, scoped, tag = 'scoped memory for tpu_custom_call.1']
    #allocation7 [shape = 'u8[131072]{0}', space=vmem, size = 0x20000, scoped, tag = 'input window, operand 2, single buffered']
    #allocation8 [shape = 'u8[8192]{0}', space=vmem, size = 0x2000, scoped, tag = 'output window, operand 0']
    %9 = vsyncpa [#allocation3], 0
    %s10 = scalar_lea.sflag [#allocation3], 1
    %11 = vsyncpa %s10, 0
    %12 = vsyncpa [#allocation6], 0
    %13 = vsyncpa [#allocation4], 0
    %s14 = scalar_lea.sflag [#allocation4], 1
    %15 = vsyncpa %s14, 0
    loop: start=0, step=1, limit=4
    $region2: #{tpu_custom_call.1} parent=1 // loop_pre_header
      _
    $region3: #{tpu_custom_call.1} parent=1 // loop_header
      %s17 = sphi 0, %s21
      %p18 = scmp.ge.s32.totalorder %s17, 4
      %s27 = sphi 0, %s29
      %s30 = sphi 0, %s27
      %s31 = sphi 0, %s30
      %s47 = sphi 0, %s31
      %s51 = sphi 0, %s51
      %s53 = sphi 0, %s51
      %s54 = sphi 0, %s53
      %s68 = sphi 0, %s54
      %s72 = sphi 0, %s72
      %s74 = sphi 0, %s72
      %s75 = sphi 0, %s74
      %s89 = sphi 0, %s75
      %s93 = sphi 0, %s93
      %s95 = sphi 0, %s93
      %s96 = sphi 0, %s95
      %s110 = sphi 0, %s96
      %s116 = sphi 0, %s118
      %s119 = sphi 0, %s116
      %s120 = sphi 0, %s119
      %s136 = sphi 0, %s120
    $region4: #{tpu_custom_call.1} parent=1 // loop_header_branch
      %20 = sbr.rel (%p18) target = $region8
    $region5: #{tpu_custom_call.1} parent=1 // loop_body
      %s22 = ssub.s32 %s17, 1
      %s23 = ssub.s32 %s17, 2
      %s24 = sadd.s32 %s17, 1
      %s25 = ssub.s32 %s17, %s24
      %p26 = scmp.eq.s32.totalorder %s25, 0
      %s28 = sadd.s32 %s27, 1
      %s29 = scalar_select %p26, %s27, %s28
      %p32 = pneg %p26
      %p33 = scmp.eq.s32.totalorder %s17, 1
      %p34 = por %p32, %p33
      %p35 = scmp.ne.s32.totalorder %s27, %s30
      %p36 = scmp.eq.s32.totalorder %s17, 0
      %p37 = por %p35, %p36
      %p38 = scmp.ne.s32.totalorder %s27, %s30
      %p39 = scmp.eq.s32.totalorder %s22, 1
      %p40 = por %p38, %p39
      %p41 = scmp.ne.s32.totalorder %s30, %s31
      %p42 = scmp.eq.s32.totalorder %s22, 0
      %p43 = por %p41, %p42
      %p44 = scmp.ne.s32.totalorder %s30, %s31
      %p45 = scmp.eq.s32.totalorder %s23, 1
      %p46 = por %p44, %p45
      %p48 = scmp.ne.s32.totalorder %s31, %s47
      %p49 = scmp.eq.s32.totalorder %s23, 0
      %p50 = por %p48, %p49
      %s52 = sadd.s32 %s51, 1
      %p55 = scmp.eq.s32.totalorder %s17, 1
      %p56 = scmp.ne.s32.totalorder %s51, %s53
      %p57 = scmp.eq.s32.totalorder %s17, 0
      %p58 = por %p56, %p57
      %p59 = scmp.ne.s32.totalorder %s51, %s53
      %p60 = scmp.eq.s32.totalorder %s22, 1
      %p61 = por %p59, %p60
      %p62 = scmp.ne.s32.totalorder %s53, %s54
      %p63 = scmp.eq.s32.totalorder %s22, 0
      %p64 = por %p62, %p63
      %p65 = scmp.ne.s32.totalorder %s53, %s54
      %p66 = scmp.eq.s32.totalorder %s23, 1
      %p67 = por %p65, %p66
      %p69 = scmp.ne.s32.totalorder %s54, %s68
      %p70 = scmp.eq.s32.totalorder %s23, 0
      %p71 = por %p69, %p70
      %s73 = sadd.s32 %s72, 1
      %p76 = scmp.eq.s32.totalorder %s17, 1
      %p77 = scmp.ne.s32.totalorder %s72, %s74
      %p78 = scmp.eq.s32.totalorder %s17, 0
      %p79 = por %p77, %p78
      %p80 = scmp.ne.s32.totalorder %s72, %s74
      %p81 = scmp.eq.s32.totalorder %s22, 1
      %p82 = por %p80, %p81
      %p83 = scmp.ne.s32.totalorder %s74, %s75
      %p84 = scmp.eq.s32.totalorder %s22, 0
      %p85 = por %p83, %p84
      %p86 = scmp.ne.s32.totalorder %s74, %s75
      %p87 = scmp.eq.s32.totalorder %s23, 1
      %p88 = por %p86, %p87
      %p90 = scmp.ne.s32.totalorder %s75, %s89
      %p91 = scmp.eq.s32.totalorder %s23, 0
      %p92 = por %p90, %p91
      %s94 = sadd.s32 %s93, 1
      %p97 = scmp.eq.s32.totalorder %s17, 1
      %p98 = scmp.ne.s32.totalorder %s93, %s95
      %p99 = scmp.eq.s32.totalorder %s17, 0
      %p100 = por %p98, %p99
      %p101 = scmp.ne.s32.totalorder %s93, %s95
      %p102 = scmp.eq.s32.totalorder %s22, 1
      %p103 = por %p101, %p102
      %p104 = scmp.ne.s32.totalorder %s95, %s96
      %p105 = scmp.eq.s32.totalorder %s22, 0
      %p106 = por %p104, %p105
      %p107 = scmp.ne.s32.totalorder %s95, %s96
      %p108 = scmp.eq.s32.totalorder %s23, 1
      %p109 = por %p107, %p108
      %p111 = scmp.ne.s32.totalorder %s96, %s110
      %p112 = scmp.eq.s32.totalorder %s23, 0
      %p113 = por %p111, %p112
      %s114 = ssub.s32 %s17, %s24
      %p115 = scmp.eq.s32.totalorder %s114, 0
      %s117 = sadd.s32 %s116, 1
      %s118 = scalar_select %p115, %s116, %s117
      %p121 = pneg %p115
      %p122 = scmp.eq.s32.totalorder %s17, 1
      %p123 = por %p121, %p122
      %p124 = scmp.ne.s32.totalorder %s116, %s119
      %p125 = scmp.eq.s32.totalorder %s17, 0
      %p126 = por %p124, %p125
      %p127 = scmp.ne.s32.totalorder %s116, %s119
      %p128 = scmp.eq.s32.totalorder %s22, 1
      %p129 = por %p127, %p128
      %p130 = scmp.ne.s32.totalorder %s119, %s120
      %p131 = scmp.eq.s32.totalorder %s22, 0
      %p132 = por %p130, %p131
      %p133 = scmp.ne.s32.totalorder %s119, %s120
      %p134 = scmp.eq.s32.totalorder %s23, 1
      %p135 = por %p133, %p134
      %p137 = scmp.ne.s32.totalorder %s120, %s136
      %p138 = scmp.eq.s32.totalorder %s23, 0
      %p139 = por %p137, %p138
      %p140 = scmp.le.s32.totalorder 1, %s17
      %p141 = scmp.lt.s32.totalorder %s17, 3
      %p142 = pnand %p140, %p141
      %p143 = pneg %p142
      // Predicated region
      $region9: #{tpu_custom_call.1} parent=5 // pred_check
        _
      $region10: #{tpu_custom_call.1} parent=5 // pred_check_branch
        %145 = sbr.rel (%p142) target = $region12
      $region11: #{tpu_custom_call.1} parent=5 // pred_region
        %s146 = ssub.s32 %s17, 1
        // Predicated region
        $region13: #{tpu_custom_call.1} parent=11 // pred_check
          %p147 = pneg %p64
        $region14: #{tpu_custom_call.1} parent=11 // pred_check_branch
          %149 = sbr.rel (%p147) target = $region16
        $region15: #{tpu_custom_call.1} parent=11 // pred_region
          %s151 = ssub.s32 4096, 4096
          %152 = vsyncadd [#allocation6], %s151
          %s153 = sshll.u32 [#allocation5], 4
          %s154 = int_to_ptr.vmem [resolvable:$true] %s153
          %159 = dma.hbm_to_vmem [thread:$0]  %s1, 4096, %s154, [#allocation6], 256, 256, 16
        $region16: #{tpu_custom_call.1} parent=11 // pred_fallthru
          _
        // Predicated region
        $region17: #{tpu_custom_call.1} parent=11 // pred_check
          %p160 = pneg %p85
        $region18: #{tpu_custom_call.1} parent=11 // pred_check_branch
          %162 = sbr.rel (%p160) target = $region20
        $region19: #{tpu_custom_call.1} parent=11 // pred_region
          %s164 = ssub.s32 4096, 4096
          %165 = vsyncadd [#allocation6], %s164
          %s166 = sshll.u32 [#allocation7], 4
          %s167 = int_to_ptr.vmem [resolvable:$true] %s166
          %172 = dma.hbm_to_vmem [thread:$0]  %s2, 4096, %s167, [#allocation6], 256, 256, 16
        $region20: #{tpu_custom_call.1} parent=11 // pred_fallthru
          _
        // Predicated region
        $region21: #{tpu_custom_call.1} parent=11 // pred_check
          %p173 = pneg %p106
        $region22: #{tpu_custom_call.1} parent=11 // pred_check_branch
          %175 = sbr.rel (%p173) target = $region24
        $region23: #{tpu_custom_call.1} parent=11 // pred_region
          _
        $region24: #{tpu_custom_call.1} parent=11 // pred_fallthru
          _
      $region12: #{tpu_custom_call.1} parent=5 // pred_fallthru
        _
      %p176 = scmp.lt.s32.totalorder %s17, 2
      // Predicated region
      $region25: #{tpu_custom_call.1} parent=5 // pred_check
        %p177 = pneg %p176
      $region26: #{tpu_custom_call.1} parent=5 // pred_check_branch
        %179 = sbr.rel (%p177) target = $region28
      $region27: #{tpu_custom_call.1} parent=5 // pred_region
        // Predicated region
        $region29: #{tpu_custom_call.1} parent=27 // pred_check
          %p180 = pneg %p37
        $region30: #{tpu_custom_call.1} parent=27 // pred_check_branch
          %182 = sbr.rel (%p180) target = $region32
        $region31: #{tpu_custom_call.1} parent=27 // pred_region
          %s183 = sand.u32 %s27, 1
          %s184 = scalar_lea.sflag [#allocation3], %s183
          %s185 = sand.u32 %s27, 1
          %s186 = smul.addr %s185, 16
          %s187 = scalar_lea.vmem [#allocation2], %s186
          %s189 = ssub.s32 256, 256
          %190 = vsyncadd %s184, %s189
          %s191 = smul.addr %s17, 2
          %s192 = smul.addr %s191, 128
          %s193 = scalar_lea.hbm %s0, %s192
          %s195 = sshll.u32 %s187, 4
          %s196 = int_to_ptr.vmem [resolvable:$true] %s195
          %198 = dma.hbm_to_vmem [thread:$0]  %s193, 256, %s196, %s184
        $region32: #{tpu_custom_call.1} parent=27 // pred_fallthru
          _
      $region28: #{tpu_custom_call.1} parent=5 // pred_fallthru
        _
      %p199 = scmp.le.s32.totalorder 1, %s17
      %p200 = scmp.lt.s32.totalorder %s17, 3
      %p201 = pnand %p199, %p200
      %p202 = pneg %p201
      // Predicated region
      $region33: #{tpu_custom_call.1} parent=5 // pred_check
        _
      $region34: #{tpu_custom_call.1} parent=5 // pred_check_branch
        %204 = sbr.rel (%p201) target = $region36
      $region35: #{tpu_custom_call.1} parent=5 // pred_region
        %s205 = ssub.s32 %s17, 1
        %s206 = sand.u32 %s30, 1
        %s207 = scalar_lea.sflag [#allocation3], %s206
        %s208 = sand.u32 %s30, 1
        %s209 = smul.addr %s208, 16
        %s210 = scalar_lea.vmem [#allocation2], %s209
        // Predicated region
        $region37: #{tpu_custom_call.1} parent=35 // pred_check
          %p211 = pneg %p43
        $region38: #{tpu_custom_call.1} parent=35 // pred_check_branch
          %213 = sbr.rel (%p211) target = $region40
        $region39: #{tpu_custom_call.1} parent=35 // pred_region
          %214 = dma.done %s207, 256
        $region40: #{tpu_custom_call.1} parent=35 // pred_fallthru
          _
        // Predicated region
        $region41: #{tpu_custom_call.1} parent=35 // pred_check
          %p215 = pneg %p64
        $region42: #{tpu_custom_call.1} parent=35 // pred_check_branch
          %217 = sbr.rel (%p215) target = $region44
        $region43: #{tpu_custom_call.1} parent=35 // pred_region
          %218 = dma.done [#allocation6], 4096
        $region44: #{tpu_custom_call.1} parent=35 // pred_fallthru
          _
        // Predicated region
        $region45: #{tpu_custom_call.1} parent=35 // pred_check
          %p219 = pneg %p85
        $region46: #{tpu_custom_call.1} parent=35 // pred_check_branch
          %221 = sbr.rel (%p219) target = $region48
        $region47: #{tpu_custom_call.1} parent=35 // pred_region
          %222 = dma.done [#allocation6], 4096
        $region48: #{tpu_custom_call.1} parent=35 // pred_fallthru
          _
        %s223 = sand.u32 %s30, 1
        %s224 = scalar_lea.sflag [#allocation3], %s223
        %s225 = sand.u32 %s30, 1
        %s226 = smul.addr %s225, 16
        %s227 = scalar_lea.vmem [#allocation2], %s226
        %p228 = pneg %p43
        %p229 = pneg %p40
        %p230 = pneg %p64
        %p231 = pneg %p61
        %p232 = pneg %p85
        %p233 = pneg %p82
        %p234 = pneg %p106
        %p235 = pneg %p103
        %p236 = pneg %p132
        %p237 = pneg %p129
        %s238 = sand.u32 %s119, 1
        %s239 = scalar_lea.sflag [#allocation4], %s238
        %s240 = sand.u32 %s119, 1
        %s241 = smul.addr %s240, 8
        %s242 = scalar_lea.vmem [#allocation8], %s241
        %v243 = vld [vmem:[%s210] sm:$0xff]
        %v244 = vld [vmem:[%s210 + $0x8] sm:$0xff]
        %v245 = vmul.f32 %v243, %v243
        %v246 = vmul.f32 %v244, %v244
        %v247 = vld [vmem:[#allocation5] sm:$0xff]
        %v248 = vld [vmem:[#allocation5 + $0x8] sm:$0xff]
        %v249 = vld [vmem:[#allocation5 + $0x10] sm:$0xff]
        %v250 = vld [vmem:[#allocation5 + $0x18] sm:$0xff]
        %v251 = vld [vmem:[#allocation5 + $0x20] sm:$0xff]
        %v252 = vld [vmem:[#allocation5 + $0x28] sm:$0xff]
        %v253 = vld [vmem:[#allocation5 + $0x30] sm:$0xff]
        %v254 = vld [vmem:[#allocation5 + $0x38] sm:$0xff]
        %v255 = vld [vmem:[#allocation5 + $0x40] sm:$0xff]
        %v256 = vld [vmem:[#allocation5 + $0x48] sm:$0xff]
        %v257 = vld [vmem:[#allocation5 + $0x50] sm:$0xff]
        %v258 = vld [vmem:[#allocation5 + $0x58] sm:$0xff]
        %v259 = vld [vmem:[#allocation5 + $0x60] sm:$0xff]
        %v260 = vld [vmem:[#allocation5 + $0x68] sm:$0xff]
        %v261 = vld [vmem:[#allocation5 + $0x70] sm:$0xff]
        %v262 = vld [vmem:[#allocation5 + $0x78] sm:$0xff]
        %v263 = vld [vmem:[#allocation5 + $0x80] sm:$0xff]
        %v264 = vld [vmem:[#allocation5 + $0x88] sm:$0xff]
        %v265 = vld [vmem:[#allocation5 + $0x90] sm:$0xff]
        %v266 = vld [vmem:[#allocation5 + $0x98] sm:$0xff]
        %v267 = vld [vmem:[#allocation5 + $0xa0] sm:$0xff]
        %v268 = vld [vmem:[#allocation5 + $0xa8] sm:$0xff]
        %v269 = vld [vmem:[#allocation5 + $0xb0] sm:$0xff]
        %v270 = vld [vmem:[#allocation5 + $0xb8] sm:$0xff]
        %v271 = vld [vmem:[#allocation5 + $0xc0] sm:$0xff]
        %v272 = vld [vmem:[#allocation5 + $0xc8] sm:$0xff]
        %v273 = vld [vmem:[#allocation5 + $0xd0] sm:$0xff]
        %v274 = vld [vmem:[#allocation5 + $0xd8] sm:$0xff]
        %v275 = vld [vmem:[#allocation5 + $0xe0] sm:$0xff]
        %v276 = vld [vmem:[#allocation5 + $0xe8] sm:$0xff]
        %v277 = vld [vmem:[#allocation5 + $0xf0] sm:$0xff]
        %v278 = vld [vmem:[#allocation5 + $0xf8] sm:$0xff]
        %v279 = vld [vmem:[#allocation7] sm:$0xff]
        %v280 = vld [vmem:[#allocation7 + $0x8] sm:$0xff]
        %v281 = vld [vmem:[#allocation7 + $0x10] sm:$0xff]
        %v282 = vld [vmem:[#allocation7 + $0x18] sm:$0xff]
        %v283 = vld [vmem:[#allocation7 + $0x20] sm:$0xff]
        %v284 = vld [vmem:[#allocation7 + $0x28] sm:$0xff]
        %v285 = vld [vmem:[#allocation7 + $0x30] sm:$0xff]
        %v286 = vld [vmem:[#allocation7 + $0x38] sm:$0xff]
        %v287 = vld [vmem:[#allocation7 + $0x40] sm:$0xff]
        %v288 = vld [vmem:[#allocation7 + $0x48] sm:$0xff]
        %v289 = vld [vmem:[#allocation7 + $0x50] sm:$0xff]
        %v290 = vld [vmem:[#allocation7 + $0x58] sm:$0xff]
        %v291 = vld [vmem:[#allocation7 + $0x60] sm:$0xff]
        %v292 = vld [vmem:[#allocation7 + $0x68] sm:$0xff]
        %v293 = vld [vmem:[#allocation7 + $0x70] sm:$0xff]
        %v294 = vld [vmem:[#allocation7 + $0x78] sm:$0xff]
        %v295 = vld [vmem:[#allocation7 + $0x80] sm:$0xff]
        %v296 = vld [vmem:[#allocation7 + $0x88] sm:$0xff]
        %v297 = vld [vmem:[#allocation7 + $0x90] sm:$0xff]
        %v298 = vld [vmem:[#allocation7 + $0x98] sm:$0xff]
        %v299 = vld [vmem:[#allocation7 + $0xa0] sm:$0xff]
        %v300 = vld [vmem:[#allocation7 + $0xa8] sm:$0xff]
        %v301 = vld [vmem:[#allocation7 + $0xb0] sm:$0xff]
        %v302 = vld [vmem:[#allocation7 + $0xb8] sm:$0xff]
        %v303 = vld [vmem:[#allocation7 + $0xc0] sm:$0xff]
        %v304 = vld [vmem:[#allocation7 + $0xc8] sm:$0xff]
        %v305 = vld [vmem:[#allocation7 + $0xd0] sm:$0xff]
        %v306 = vld [vmem:[#allocation7 + $0xd8] sm:$0xff]
        %v307 = vld [vmem:[#allocation7 + $0xe0] sm:$0xff]
        %v308 = vld [vmem:[#allocation7 + $0xe8] sm:$0xff]
        %v309 = vld [vmem:[#allocation7 + $0xf0] sm:$0xff]
        %v310 = vld [vmem:[#allocation7 + $0xf8] sm:$0xff]
        %311 = vmatprep.subr.mxu0 %v280
        %312 = vmatpush1.xpose.msra.mxu0 %v279
        %313 = vmatprep.subr.mxu0 %v282
        %314 = vmatpush1.xpose.msra.mxu0 %v281
        %315 = vmatprep.subr.mxu0 %v284
        %316 = vmatpush1.xpose.msra.mxu0 %v283
        %317 = vmatprep.subr.mxu0 %v286
        %318 = vmatpush1.xpose.msra.mxu0 %v285
        %319 = vmatprep.subr.mxu0 %v288
        %320 = vmatpush1.xpose.msra.mxu0 %v287
        %321 = vmatprep.subr.mxu0 %v290
        %322 = vmatpush1.xpose.msra.mxu0 %v289
        %323 = vmatprep.subr.mxu0 %v292
        %324 = vmatpush1.xpose.msra.mxu0 %v291
        %325 = vmatprep.subr.mxu0 %v294
        %326 = vmatpush1.xpose.msra.mxu0 %v293
        %327 = vmatprep.subr.mxu0 %v296
        %328 = vmatpush1.xpose.msra.mxu0 %v295
        %329 = vmatprep.subr.mxu0 %v298
        %330 = vmatpush1.xpose.msra.mxu0 %v297
        %331 = vmatprep.subr.mxu0 %v300
        %332 = vmatpush1.xpose.msra.mxu0 %v299
        %333 = vmatprep.subr.mxu0 %v302
        %334 = vmatpush1.xpose.msra.mxu0 %v301
        %335 = vmatprep.subr.mxu0 %v304
        %336 = vmatpush1.xpose.msra.mxu0 %v303
        %337 = vmatprep.subr.mxu0 %v306
        %338 = vmatpush1.xpose.msra.mxu0 %v305
        %339 = vmatprep.subr.mxu0 %v308
        %340 = vmatpush1.xpose.msra.mxu0 %v307
        %341 = vmatprep.subr.mxu0 %v310
        %342 = vmatpush1.xpose.msra.mxu0 %v309
        %343 = vmatprep.subr.mxu0 0.0
        %344 = vmatpush1.xpose.msra.mxu0 0.0
        %345 = vmatprep.subr.mxu0 0.0
        %346 = vmatpush1.xpose.msra.mxu0 0.0
        %347 = vmatprep.subr.mxu0 0.0
        %348 = vmatpush1.xpose.msra.mxu0 0.0
        %349 = vmatprep.subr.mxu0 0.0
        %350 = vmatpush1.xpose.msra.mxu0 0.0
        %351 = vmatprep.subr.mxu0 0.0
        %352 = vmatpush1.xpose.msra.mxu0 0.0
        %353 = vmatprep.subr.mxu0 0.0
        %354 = vmatpush1.xpose.msra.mxu0 0.0
        %355 = vmatprep.subr.mxu0 0.0
        %356 = vmatpush1.xpose.msra.mxu0 0.0
        %357 = vmatprep.subr.mxu0 0.0
        %358 = vmatpush1.xpose.msra.mxu0 0.0
        %359 = vmatprep.subr.mxu0 0.0
        %360 = vmatpush1.xpose.msra.mxu0 0.0
        %361 = vmatprep.subr.mxu0 0.0
        %362 = vmatpush1.xpose.msra.mxu0 0.0
        %363 = vmatprep.subr.mxu0 0.0
        %364 = vmatpush1.xpose.msra.mxu0 0.0
        %365 = vmatprep.subr.mxu0 0.0
        %366 = vmatpush1.xpose.msra.mxu0 0.0
        %367 = vmatprep.subr.mxu0 0.0
        %368 = vmatpush1.xpose.msra.mxu0 0.0
        %369 = vmatprep.subr.mxu0 0.0
        %370 = vmatpush1.xpose.msra.mxu0 0.0
        %371 = vmatprep.subr.mxu0 0.0
        %372 = vmatpush1.xpose.msra.mxu0 0.0
        %373 = vmatprep.subr.mxu0 0.0
        %374 = vmatpush1.xpose.msra.mxu0 0.0
        %375 = vmatprep.mubr.f32.mxu0 %v244
        %376 = vmatmul.mubr.f32.gmra.mrb[0].mxu0 %v243
        %v377 = vpop.f32.mrb[0].mxu0
        %v378 = vadd.f32 0.0, %v377
        %v379 = vpop.f32.mrb[0].mxu0
        %380 = vdwg.mxu0
        %381 = vmatprep.subr.mxu0 %v248
        %382 = vmatpush1.xpose.msra.mxu0 %v247
        %383 = vmatprep.subr.mxu0 %v250
        %384 = vmatpush1.xpose.msra.mxu0 %v249
        %385 = vmatprep.subr.mxu0 %v252
        %386 = vmatpush1.xpose.msra.mxu0 %v251
        %387 = vmatprep.subr.mxu0 %v254
        %388 = vmatpush1.xpose.msra.mxu0 %v253
        %389 = vmatprep.subr.mxu0 %v256
        %390 = vmatpush1.xpose.msra.mxu0 %v255
        %391 = vmatprep.subr.mxu0 %v258
        %392 = vmatpush1.xpose.msra.mxu0 %v257
        %393 = vmatprep.subr.mxu0 %v260
        %394 = vmatpush1.xpose.msra.mxu0 %v259
        %395 = vmatprep.subr.mxu0 %v262
        %396 = vmatpush1.xpose.msra.mxu0 %v261
        %397 = vmatprep.subr.mxu0 %v264
        %398 = vmatpush1.xpose.msra.mxu0 %v263
        %399 = vmatprep.subr.mxu0 %v266
        %400 = vmatpush1.xpose.msra.mxu0 %v265
        %401 = vmatprep.subr.mxu0 %v268
        %402 = vmatpush1.xpose.msra.mxu0 %v267
        %403 = vmatprep.subr.mxu0 %v270
        %404 = vmatpush1.xpose.msra.mxu0 %v269
        %405 = vmatprep.subr.mxu0 %v272
        %406 = vmatpush1.xpose.msra.mxu0 %v271
        %407 = vmatprep.subr.mxu0 %v274
        %408 = vmatpush1.xpose.msra.mxu0 %v273
        %409 = vmatprep.subr.mxu0 %v276
        %410 = vmatpush1.xpose.msra.mxu0 %v275
        %411 = vmatprep.subr.mxu0 %v278
        %412 = vmatpush1.xpose.msra.mxu0 %v277
        %413 = vmatprep.subr.mxu0 0.0
        %414 = vmatpush1.xpose.msra.mxu0 0.0
        %415 = vmatprep.subr.mxu0 0.0
        %416 = vmatpush1.xpose.msra.mxu0 0.0
        %417 = vmatprep.subr.mxu0 0.0
        %418 = vmatpush1.xpose.msra.mxu0 0.0
        %419 = vmatprep.subr.mxu0 0.0
        %420 = vmatpush1.xpose.msra.mxu0 0.0
        %421 = vmatprep.subr.mxu0 0.0
        %422 = vmatpush1.xpose.msra.mxu0 0.0
        %423 = vmatprep.subr.mxu0 0.0
        %424 = vmatpush1.xpose.msra.mxu0 0.0
        %425 = vmatprep.subr.mxu0 0.0
        %426 = vmatpush1.xpose.msra.mxu0 0.0
        %427 = vmatprep.subr.mxu0 0.0
        %428 = vmatpush1.xpose.msra.mxu0 0.0
        %429 = vmatprep.subr.mxu0 0.0
        %430 = vmatpush1.xpose.msra.mxu0 0.0
        %431 = vmatprep.subr.mxu0 0.0
        %432 = vmatpush1.xpose.msra.mxu0 0.0
        %433 = vmatprep.subr.mxu0 0.0
        %434 = vmatpush1.xpose.msra.mxu0 0.0
        %435 = vmatprep.subr.mxu0 0.0
        %436 = vmatpush1.xpose.msra.mxu0 0.0
        %437 = vmatprep.subr.mxu0 0.0
        %438 = vmatpush1.xpose.msra.mxu0 0.0
        %439 = vmatprep.subr.mxu0 0.0
        %440 = vmatpush1.xpose.msra.mxu0 0.0
        %441 = vmatprep.subr.mxu0 0.0
        %442 = vmatpush1.xpose.msra.mxu0 0.0
        %443 = vmatprep.subr.mxu0 0.0
        %444 = vmatpush1.xpose.msra.mxu0 0.0
        %445 = vmatprep.mubr.f32.mxu0 %v246
        %446 = vmatmul.mubr.f32.gmra.mrb[0].mxu0 %v245
        %v447 = vpop.f32.mrb[0].mxu0
        %v448 = vadd.f32 %v378, %v447
        %v449 = vpop.f32.mrb[0].mxu0
        %450 = vdwg.mxu0
        %v451 = vld [vmem:[%s3] sm:$0x1]
        %v453 = vlaneseq
        %v454 = vshrl.u32 %v453, 7
        %v455 = vsub.s32 0, %v454
        %v456 = vrot.slane %v451, %v455
        %v458 = vadd.f32 %v448, %v456
        %459 = vst [vmem:[%s242] sm:$0xff] %v458
        %s460 = sand.u32 %s119, 1
        %s461 = scalar_lea.sflag [#allocation4], %s460
        %s462 = sand.u32 %s119, 1
        %s463 = smul.addr %s462, 8
        %s464 = scalar_lea.vmem [#allocation8], %s463
        // Predicated region
        $region49: #{tpu_custom_call.1} parent=35 // pred_check
          %p465 = pneg %p129
        $region50: #{tpu_custom_call.1} parent=35 // pred_check_branch
          %467 = sbr.rel (%p465) target = $region52
        $region51: #{tpu_custom_call.1} parent=35 // pred_region
          %s469 = ssub.s32 128, 128
          %470 = vsyncadd %s461, %s469
          %s471 = smul.addr %s22, 128
          %s472 = scalar_lea.hbm %s4, %s471
          %s474 = sshll.u32 %s464, 4
          %s475 = int_to_ptr.vmem [resolvable:$true] %s474
          %477 = dma.vmem_to_hbm [thread:$0]  %s475, 128, %s472, %s461
        $region52: #{tpu_custom_call.1} parent=35 // pred_fallthru
          _
      $region36: #{tpu_custom_call.1} parent=5 // pred_fallthru
        _
      %p478 = scmp.le.s32.totalorder 2, %s17
      // Predicated region
      $region53: #{tpu_custom_call.1} parent=5 // pred_check
        %p479 = pneg %p478
      $region54: #{tpu_custom_call.1} parent=5 // pred_check_branch
        %481 = sbr.rel (%p479) target = $region56
      $region55: #{tpu_custom_call.1} parent=5 // pred_region
        %s482 = ssub.s32 %s17, 2
        // Predicated region
        $region57: #{tpu_custom_call.1} parent=55 // pred_check
          %p483 = pneg %p135
        $region58: #{tpu_custom_call.1} parent=55 // pred_check_branch
          %485 = sbr.rel (%p483) target = $region60
        $region59: #{tpu_custom_call.1} parent=55 // pred_region
          %s486 = sand.u32 %s120, 1
          %s487 = scalar_lea.sflag [#allocation4], %s486
          %s488 = sand.u32 %s120, 1
          %s489 = smul.addr %s488, 8
          %s490 = scalar_lea.vmem [#allocation8], %s489
          %491 = dma.done %s487, 128
        $region60: #{tpu_custom_call.1} parent=55 // pred_fallthru
          _
      $region56: #{tpu_custom_call.1} parent=5 // pred_fallthru
        _
    $region6: #{tpu_custom_call.1} parent=1 // loop_footer
      %s21 = sadd.s32 1, %s17
    $region7: #{tpu_custom_call.1} parent=1 // loop_footer_branch
      %16 = sbr.rel target = $region3
    $region8: #{tpu_custom_call.1} parent=1 // loop_exit
      _
    %492 = vsyncpa [#allocation3], 1
    %s493 = scalar_lea.sflag [#allocation3], 1
    %494 = vsyncpa %s493, 1
    %495 = vsyncpa [#allocation6], 1
    %496 = vsyncpa [#allocation4], 1
    %s497 = scalar_lea.sflag [#allocation4], 1
    %498 = vsyncpa %s497, 1

</llo_original>
